<compile_context>
chip_gen: v7x
topology: tpu7x:2x2x1
jax: 0.10.0
libtpu: 0.0.40
codegen_flags: <defaults>
</compile_context>

<pallas_src>
import functools

import jax
import jax.numpy as jnp
from jax.experimental import pallas as pl
from jax.experimental.pallas import tpu as pltpu

_WIDTH_CANDIDATES = (1024, 512, 256, 128)   # lane-dense slab widths (multiples of 128)


# ---------------------------------------------------------------------------
# Pallas kernel: out = (-coeff) * g, coeff read from SMEM at runtime.
# Multiply in f32 and cast back so bf16/fp8 cotangents aren't scaled by a
# rounded coefficient.
# ---------------------------------------------------------------------------
def _neg_scale_kernel(coeff_ref, g_ref, o_ref):
    neg_coeff = -coeff_ref[0, 0]                                   # f32 scalar (SMEM)
    o_ref[...] = (g_ref[...].astype(jnp.float32) * neg_coeff).astype(o_ref.dtype)


@functools.lru_cache(maxsize=None)
def _target_block_bytes():
    """Per-generation block size; VMEM footprint is ~4x this (in+out, 2 bufs)."""
    try:
        kind = jax.devices()[0].device_kind.lower()
    except Exception:
        kind = ""
    if ("v6" in kind) or ("v7" in kind):
        return 4 << 20      # 16 MiB footprint, inside the 32 MiB scoped default
    return 2 << 20          # v5e / unknown: 8 MiB footprint, inside 16 MiB default


def _pick_tile_rows(rows, width, itemsize, target_bytes):
    # dtype-aware sublane packing: 8 rows (f32), 16 (bf16), 32 (int8/fp8)
    pack = max(8, 32 // max(int(itemsize), 1))
    tile = max(pack, (target_bytes // (width * int(itemsize))) // pack * pack)
    if rows >= 2 * pack:
        # Keep the "parallel" grid axis >= 2 steps so v7x can feed both TCs.
        half = (((rows + 1) // 2) + pack - 1) // pack * pack
        tile = min(tile, half)
    return min(tile, rows)


def _reverse_scale_xla(g, coeff):
    """Plain-JAX gradient reversal -- lets XLA fuse the scale into neighbours."""
    return (g.astype(jnp.float32) * (-coeff)).astype(g.dtype)


def _reverse_scale_pallas(g, coeff):
    """Pallas elementwise kernel computing (-coeff) * g; shape/dtype preserved."""
    shape, dtype = g.shape, g.dtype
    n = g.size
    # Ragged / empty sizes: a single fused XLA multiply beats the old
    # pad -> kernel -> slice path (~3 HBM round trips), so don't pad.
    width = next((w for w in _WIDTH_CANDIDATES if n % w == 0), None) if n else None
    if width is None:
        return _reverse_scale_xla(g, coeff)

    slab = g.reshape(n // width, width)            # lane-dense, pad-free view
    rows = slab.shape[0]
    itemsize = slab.dtype.itemsize
    tile = _pick_tile_rows(rows, width, itemsize, _target_block_bytes())
    blk = pl.BlockSpec((tile, width), lambda i: (i, 0))

    out = pl.pallas_call(
        _neg_scale_kernel,
        out_shape=jax.ShapeDtypeStruct(slab.shape, slab.dtype),
        grid=(pl.cdiv(rows, tile),),               # ragged last block is masked
        in_specs=[
            pl.BlockSpec(memory_space=pltpu.MemorySpace.SMEM),  # runtime coeff scalar
            blk,
        ],
        out_specs=blk,
        input_output_aliases={1: 0},               # write in place over dead cotangent
        compiler_params=pltpu.CompilerParams(
            dimension_semantics=("parallel",)),
    )(coeff.reshape(1, 1), slab)

    return out.reshape(shape)


# ---------------------------------------------------------------------------
# GRLayer: identity forward, -coeff * grad backward (custom_vjp).
# coeff is a traced array input, so changing its value never retraces or
# recompiles the kernel.
# ---------------------------------------------------------------------------
def _make_grl(reverse_fn):
    @jax.custom_vjp
    def grl(x, coeff):
        return x

    def fwd(x, coeff):
        return x, coeff

    def bwd(coeff, g):
        return reverse_fn(g, coeff), jnp.zeros_like(coeff)

    grl.defvjp(fwd, bwd)
    return grl


_grl_pallas = _make_grl(_reverse_scale_pallas)
_grl_xla = _make_grl(_reverse_scale_xla)


def gr_layer(x, coeff=1.0, *, use_pallas=True):
    """Gradient Reversal Layer: output = input (identity), grad = -coeff * grad_out.

    use_pallas=False emits the backward as a plain multiply so XLA can fuse it
    into the cotangent's producer/consumer (fastest when GRL sits inside a
    larger jitted graph).
    """
    coeff_arr = jnp.asarray(coeff, jnp.float32)
    return (_grl_pallas if use_pallas else _grl_xla)(x, coeff_arr)


# ---------------------------------------------------------------------------
# Demo / self-check
# ---------------------------------------------------------------------------
if __name__ == "__main__":
    key = jax.random.PRNGKey(0)

    # NCHW feature map: batch=2, channels=4, spatial=16x16 (128-aligned size).
    x = jax.random.normal(key, (2, 4, 16, 16), dtype=jnp.float32)

    # Forward: must be identity (zero-cost pass-through).
    y = jax.block_until_ready(gr_layer(x, 1.0))
    assert y.shape == x.shape and y.dtype == x.dtype
    assert jnp.array_equal(y, x), "forward is not identity"

    # Backward (runs the Pallas kernel): grad of sum is -coeff everywhere.
    coeff = 0.5
    g = jax.block_until_ready(jax.grad(lambda a: jnp.sum(gr_layer(a, coeff)))(x))
    assert jnp.allclose(g, -coeff * jnp.ones_like(x)), "gradient not reversed"

    # Ragged element count (not 128-divisible) takes the fused plain-JAX path.
    x2 = jax.random.normal(jax.random.PRNGKey(1), (3, 5, 7), dtype=jnp.float32)
    g2 = jax.block_until_ready(jax.grad(lambda a: jnp.sum(gr_layer(a, 2.0)))(x2))
    assert jnp.allclose(g2, -2.0 * jnp.ones_like(x2)), "ragged gradient wrong"

    # Larger jitted case with a *runtime* coeff: one compile serves all coeff
    # values, and the grid has >= 2 "parallel" steps (feeds both v7x TCs).
    x3 = jax.random.normal(jax.random.PRNGKey(2), (2, 16, 128, 128),
                           dtype=jnp.float32)
    grad_fn = jax.jit(jax.grad(lambda a, c: jnp.sum(gr_layer(a, c)), argnums=0))
    g3 = jax.block_until_ready(grad_fn(x3, jnp.float32(1.5)))
    assert jnp.allclose(g3, -1.5 * jnp.ones_like(x3)), "jit gradient wrong"
    g3b = jax.block_until_ready(grad_fn(x3, jnp.float32(3.0)))   # no recompile
    assert jnp.allclose(g3b, -3.0 * jnp.ones_like(x3)), "jit gradient wrong (coeff=3)"

    # Optional fully-fused backward (no standalone kernel at all).
    g4 = jax.block_until_ready(
        jax.grad(lambda a: jnp.sum(gr_layer(a, 0.25, use_pallas=False)))(x))
    assert jnp.allclose(g4, -0.25 * jnp.ones_like(x)), "xla-fused gradient wrong"

    # bf16 cotangent exercises the f32-multiply-then-cast path in the kernel.
    xb = jax.random.normal(jax.random.PRNGKey(3), (2, 8, 16, 128),
                           dtype=jnp.bfloat16)
    gb = jax.block_until_ready(
        jax.grad(lambda a: jnp.sum(gr_layer(a, 2.0).astype(jnp.float32)))(xb))
    assert jnp.allclose(gb.astype(jnp.float32),
                        -2.0 * jnp.ones(xb.shape, jnp.float32)), "bf16 gradient wrong"

    print("KERNEL_OK")
</pallas_src>

<mosaic_0001>
module attributes {stable_mosaic.version = 11 : i64} {
  func.func @_neg_scale_kernel(%arg0: i32, %arg1: memref<1x1xf32, #tpu.memory_space<smem>>, %arg2: memref<2x1024xf32, #tpu.memory_space<vmem>>, %arg3: memref<2x1024xf32, #tpu.memory_space<vmem>>) attributes {dimension_semantics = [#tpu.dimension_semantics<parallel>], iteration_bounds = array<i64: 1>, scalar_prefetch = 0 : i64, scratch_operands = 0 : i64, tpu.core_type = #tpu.core_type<tc>, window_params = [{transform_indices = @transform_0, window_bounds = array<i64: 1, 1>}, {transform_indices = @transform_1, window_bounds = array<i64: 2, 1024>}, {transform_indices = @transform_2, window_bounds = array<i64: 2, 1024>}]} {
    %c0 = arith.constant 0 : index
    %c0_0 = arith.constant 0 : index
    %0 = memref.load %arg1[%c0, %c0_0] : memref<1x1xf32, #tpu.memory_space<smem>>
    %cst = arith.constant 0.000000e+00 : f32
    %1 = arith.subf %cst, %0 : f32
    %c0_1 = arith.constant 0 : index
    %c0_2 = arith.constant 0 : index
    %2 = vector.load %arg2[%c0_1, %c0_2] : memref<2x1024xf32, #tpu.memory_space<vmem>>, vector<2x1024xf32>
    %3 = vector.broadcast %1 : f32 to vector<2x1024xf32>
    %4 = arith.mulf %2, %3 : vector<2x1024xf32>
    %c0_3 = arith.constant 0 : index
    %c0_4 = arith.constant 0 : index
    %5 = vector.load %arg3[%c0_3, %c0_4] : memref<2x1024xf32, #tpu.memory_space<vmem>>, vector<2x1024xf32>
    tpu.vector_store %arg3[%c0_3, %c0_4], %4 {strides = array<i32>} : memref<2x1024xf32, #tpu.memory_space<vmem>>, vector<2x1024xf32>,
    return
  }
  func.func @transform_0(%arg0: i32) -> (i32, i32) {
    %c0_i32 = arith.constant 0 : i32
    %c0_i32_0 = arith.constant 0 : i32
    %c0_i32_1 = arith.constant 0 : i32
    return %c0_i32, %c0_i32_0 : i32, i32
  }
  func.func @transform_1(%arg0: i32) -> (i32, i32) {
    %c0_i32 = arith.constant 0 : i32
    %c0_i32_0 = arith.constant 0 : i32
    return %arg0, %c0_i32 : i32, i32
  }
  func.func @transform_2(%arg0: i32) -> (i32, i32) {
    %c0_i32 = arith.constant 0 : i32
    %c0_i32_0 = arith.constant 0 : i32
    return %arg0, %c0_i32 : i32, i32
  }
}

</mosaic_0001>

<llo_original>
// kernel: tpu_custom_call.1
$region0: #{tpu_custom_call.1}
  #allocation0 [shape = 'u32[]', space=smem, size = 0x4, offset = 0x4, fixed_abs, tag = 'smem constant byte address 0x4 - core index']
  #allocation1 [shape = 'u32[144,128]{1,0:T(1,128)}', space=vmem, size = 0x12000, scoped, tag = 'internal scratch']
  #allocation2 [shape = 'f32[1,1]{1,0:T(1,128)S(6)}', space=smem, size = 0x200, scoped, tag = 'scoped memory for tpu_custom_call.1']
  %s0 = inlined_call_operand.<no memory space> [shape: f32[1,1], index: 0, kind: input, shape index: {}]
  %s1 = inlined_call_operand.hbm [shape: f32[2,1024], index: 1, kind: input, shape index: {}, may-alias: {1,2}]
  %s2 = inlined_call_operand.hbm [shape: f32[2,1024], index: 2, kind: output, shape index: {}, may-alias: {1,2}]
  %s3 = sld [smem:[#allocation0]]
  $region22: #{tpu_custom_call.1} parent=0
    _
  %s5 = ssub.s32 1, %s3
  %s6 = scalar_select 0, %s5, %s3
  %7 = sst [smem:[#allocation2]] %s0
  $region1: #{tpu_custom_call.1} parent=0
    #allocation3 [shape = 'u8[8192]{0}', space=vmem, size = 0x2000, scoped, tag = 'input window, operand 1, single buffered']
    #allocation4 [shape = 's32[1]{0}', space=sflag, size = 0x4, scoped, tag = 'scoped memory for tpu_custom_call.1']
    #allocation5 [shape = 's32[1]{0}', space=sflag, size = 0x4, scoped, tag = 'scoped memory for tpu_custom_call.1']
    #allocation6 [shape = 'u8[8192]{0}', space=vmem, size = 0x2000, scoped, tag = 'output window, operand 0, single buffered']
    %8 = vsyncpa [#allocation4], 0
    %9 = vsyncpa [#allocation5], 0
    // Predicated region
    $region2: #{tpu_custom_call.1} parent=1 // pred_check
      _
    $region3: #{tpu_custom_call.1} parent=1 // pred_check_branch
      %11 = sbr.rel (0) target = $region5
    $region4: #{tpu_custom_call.1} parent=1 // pred_region
      _
    $region5: #{tpu_custom_call.1} parent=1 // pred_fallthru
      _
    // Predicated region
    $region6: #{tpu_custom_call.1} parent=1 // pred_check
      _
    $region7: #{tpu_custom_call.1} parent=1 // pred_check_branch
      %13 = sbr.rel (0) target = $region9
    $region8: #{tpu_custom_call.1} parent=1 // pred_region
      %s15 = ssub.s32 256, 256
      %16 = vsyncadd [#allocation4], %s15
      %s18 = sshll.u32 [#allocation3], 4
      %s19 = int_to_ptr.vmem [resolvable:$true] %s18
      %21 = dma.hbm_to_vmem [thread:$0]  %s1, 256, %s19, [#allocation4]
    $region9: #{tpu_custom_call.1} parent=1 // pred_fallthru
      _
    // Predicated region
    $region10: #{tpu_custom_call.1} parent=1 // pred_check
      _
    $region11: #{tpu_custom_call.1} parent=1 // pred_check_branch
      %23 = sbr.rel (0) target = $region13
    $region12: #{tpu_custom_call.1} parent=1 // pred_region
      %24 = dma.done [#allocation4], 256
    $region13: #{tpu_custom_call.1} parent=1 // pred_fallthru
      _
    %s25 = sld [smem:[#allocation2]]
    %s26 = ssub.f32 0.0, %s25
    %v27 = vld [vmem:[#allocation3] sm:$0xff]
    %v28 = vld [vmem:[#allocation3 + $0x8] sm:$0xff]
    %v29 = vstv %s26
    %v30 = vmul.f32 %v27, %v29
    %v31 = vmul.f32 %v28, %v29
    %32 = vst [vmem:[#allocation6] sm:$0xff] %v30
    %33 = vst [vmem:[#allocation6 + $0x8] sm:$0xff] %v31
    // Predicated region
    $region14: #{tpu_custom_call.1} parent=1 // pred_check
      _
    $region15: #{tpu_custom_call.1} parent=1 // pred_check_branch
      %35 = sbr.rel (0) target = $region17
    $region16: #{tpu_custom_call.1} parent=1 // pred_region
      %s37 = ssub.s32 256, 256
      %38 = vsyncadd [#allocation5], %s37
      %s40 = sshll.u32 [#allocation6], 4
      %s41 = int_to_ptr.vmem [resolvable:$true] %s40
      %43 = dma.vmem_to_hbm [thread:$0]  %s41, 256, %s2, [#allocation5]
    $region17: #{tpu_custom_call.1} parent=1 // pred_fallthru
      _
    // Predicated region
    $region18: #{tpu_custom_call.1} parent=1 // pred_check
      _
    $region19: #{tpu_custom_call.1} parent=1 // pred_check_branch
      %45 = sbr.rel (0) target = $region21
    $region20: #{tpu_custom_call.1} parent=1 // pred_region
      %46 = dma.done [#allocation5], 256
    $region21: #{tpu_custom_call.1} parent=1 // pred_fallthru
      _
    %47 = vsyncpa [#allocation4], 1
    %48 = vsyncpa [#allocation5], 1

</llo_original>
